<compile_context>
chip_gen: v7x
topology: tpu7x:2x2x1
jax: 0.10.0
libtpu: 0.0.40
codegen_flags: <defaults>
</compile_context>

<pallas_src>
import functools
import math

import jax
import jax.numpy as jnp
from jax import lax
from jax.experimental import pallas as pl
from jax.experimental.pallas import tpu as pltpu

# ------------------------- model hyper-parameters ---------------------------
RES_CH = 8          # residual_channels
EMB_DIM = 32        # embedding_dim
LCOND_DIM = 16      # l_cond_dim (> 0, so local_cond projection is applied)
SEQ = 16            # sequence length T
BATCH = 2
KSIZE = 3           # nn.Conv1d kernel size in Conv1dLayer
DILATION = 2        # dilation = 2 ** (index % dilation_cycle_length); index=1, cycle=4
INV_SQRT2 = 1.0 / math.sqrt(2.0)


# ------------------------------- kernel -------------------------------------
def residual_block_kernel(x_ref, cond_ref,
                          wc_ref, bc_ref,
                          wg_ref, bg_ref, wf_ref, bf_ref,
                          wor_ref, bor_ref, wos_ref, bos_ref,
                          res_ref, skip_ref, *, seq_len, dilation):
    N, _ = x_ref.shape                      # N = B*T rows, channels on lanes
    T, D = seq_len, dilation
    f32 = jnp.float32

    x = x_ref[...]                          # (N, C)
    cond = cond_ref[...]                    # (N, E+L)

    # Fused diffusion + local-cond projection: one (N, E+L) @ (E+L, C) matmul.
    y = x + jnp.dot(cond, wc_ref[...], preferred_element_type=f32) + bc_ref[...]

    # Dilated Conv1d(C -> 2C, k=3, padding=D, dilation=D), channels-last:
    #   out[t] = bias + y[t-D] @ W0 + y[t] @ W1 + y[t+D] @ W2   (zero padded).
    # Taps gathered with sublane rolls of the flattened (B*T, C) slab; the
    # padding masks (t < D / t >= T-D) also kill cross-batch wraparound.
    t_idx = lax.broadcasted_iota(jnp.int32, (N, 1), 0) % T
    y_m = jnp.where(t_idx >= D, pltpu.roll(y, D, axis=0), 0.0)          # y[t - D]
    y_p = jnp.where(t_idx < T - D, pltpu.roll(y, N - D, axis=0), 0.0)   # y[t + D]

    # Gate / filter halves from pre-split weights: no 2C-wide intermediate,
    # no sub-128 lane slicing; each dot is a push-latency-bound tiny matmul.
    gate = (jnp.dot(y_m, wg_ref[0], preferred_element_type=f32)
            + jnp.dot(y, wg_ref[1], preferred_element_type=f32)
            + jnp.dot(y_p, wg_ref[2], preferred_element_type=f32)
            + bg_ref[...])
    filt = (jnp.dot(y_m, wf_ref[0], preferred_element_type=f32)
            + jnp.dot(y, wf_ref[1], preferred_element_type=f32)
            + jnp.dot(y_p, wf_ref[2], preferred_element_type=f32)
            + bf_ref[...])
    z = jax.nn.sigmoid(gate) * jnp.tanh(filt)                           # (N, C) on EUP

    # output_projection (k=1 conv == per-row linear), pre-split into the
    # residual / skip halves -> two straight stores, no packing/slicing.
    res = x + jnp.dot(z, wor_ref[...], preferred_element_type=f32) + bor_ref[...]
    res_ref[...] = (res * INV_SQRT2).astype(res_ref.dtype)
    skip = jnp.dot(z, wos_ref[...], preferred_element_type=f32) + bos_ref[...]
    skip_ref[...] = skip.astype(skip_ref.dtype)


# ------------------------------ wrapper --------------------------------------
def residual_block(x, diffusion_step, local_cond, params):
    B, T, C = x.shape
    E = diffusion_step.shape[-1]
    L = local_cond.shape[-1]
    N = B * T
    assert DILATION < T, "roll+mask tap gather assumes dilation < seq_len"

    # ---- wrapper-side layout plumbing (free XLA ops; keeps the kernel clean) --
    x_flat = x.reshape(N, C)
    cond = jnp.concatenate(
        [jnp.broadcast_to(diffusion_step[:, None, :], (B, T, E)), local_cond],
        axis=-1).reshape(N, E + L)
    # fused conditioning weight / bias:  [Wd; Wl], bd + bl
    Wc = jnp.concatenate([params["Wd"], params["Wl"]], axis=0)           # (E+L, C)
    bc = params["bd"] + params["bl"]                                      # (1, C)
    # dilated-conv weights pre-split into gate / filter halves
    Wg, Wf = params["Wnn"][:, :, :C], params["Wnn"][:, :, C:]             # (K, C, C)
    bg, bf = params["bnn"][:, :C], params["bnn"][:, C:]                   # (1, C)
    # output projection pre-split into residual / skip halves
    Wor, Wos = params["Wo"][:, :C], params["Wo"][:, C:]                   # (C, C)
    bor, bos = params["bo"][:, :C], params["bo"][:, C:]                   # (1, C)

    operands = (x_flat, cond, Wc, bc, Wg, bg, Wf, bf, Wor, bor, Wos, bos)

    def full(arr):
        nd = arr.ndim
        return pl.BlockSpec(arr.shape, lambda g, _nd=nd: (0,) * _nd)

    kernel = functools.partial(residual_block_kernel, seq_len=T, dilation=DILATION)

    res, skip = pl.pallas_call(
        kernel,
        out_shape=(jax.ShapeDtypeStruct((N, C), x.dtype),
                   jax.ShapeDtypeStruct((N, C), x.dtype)),
        grid=(1,),   # single step: weights DMA'd once, no pipeline prologue re-runs
        in_specs=[full(a) for a in operands],
        out_specs=(full(x_flat), full(x_flat)),
        compiler_params=pltpu.CompilerParams(dimension_semantics=("arbitrary",)),
    )(*operands)

    return res.reshape(B, T, C), skip.reshape(B, T, C)


# --------------------- deterministic parameter init --------------------------
def init_params(key):
    C, E, L = RES_CH, EMB_DIM, LCOND_DIM
    ks = jax.random.split(key, 8)
    # nn.Linear(E, C): stored already transposed as (in, out)
    Wd = jax.random.uniform(ks[0], (E, C), jnp.float32, -1.0, 1.0) / math.sqrt(E)
    bd = jax.random.uniform(ks[1], (1, C), jnp.float32, -1.0, 1.0) / math.sqrt(E)
    # nn.Linear(L, C)
    Wl = jax.random.uniform(ks[2], (L, C), jnp.float32, -1.0, 1.0) / math.sqrt(L)
    bl = jax.random.uniform(ks[3], (1, C), jnp.float32, -1.0, 1.0) / math.sqrt(L)
    # Conv1d(C, 2C, 3) kaiming_normal_: torch weight (2C, C, 3) -> taps (3, C, 2C)
    fan_in_nn = C * KSIZE
    Wnn = jax.random.normal(ks[4], (KSIZE, C, 2 * C), jnp.float32) * math.sqrt(2.0 / fan_in_nn)
    bnn = jax.random.uniform(ks[5], (1, 2 * C), jnp.float32, -1.0, 1.0) / math.sqrt(fan_in_nn)
    # Conv1d(C, 2C, 1): torch weight (2C, C, 1) -> (C, 2C)
    Wo = jax.random.normal(ks[6], (C, 2 * C), jnp.float32) * math.sqrt(2.0 / C)
    bo = jax.random.uniform(ks[7], (1, 2 * C), jnp.float32, -1.0, 1.0) / math.sqrt(C)
    return dict(Wd=Wd, bd=bd, Wl=Wl, bl=bl, Wnn=Wnn, bnn=bnn, Wo=Wo, bo=bo)


# ---------------------------- plain-JAX reference ----------------------------
def residual_block_ref(x, dstep, lcond, params):
    B, T, C = x.shape
    y = x + (dstep @ params["Wd"] + params["bd"])[:, None, :]
    y = y + lcond @ params["Wl"] + params["bl"]
    ypad = jnp.pad(y, ((0, 0), (DILATION, DILATION), (0, 0)))
    conv = jnp.zeros((B, T, 2 * C), jnp.float32) + params["bnn"]
    for k in range(KSIZE):
        conv = conv + ypad[:, k * DILATION:k * DILATION + T, :] @ params["Wnn"][k]
    gate, filt = conv[..., :C], conv[..., C:]
    z = jax.nn.sigmoid(gate) * jnp.tanh(filt)
    o = z @ params["Wo"] + params["bo"]
    return (x + o[..., :C]) * INV_SQRT2, o[..., C:]


# --------------------------------- main ---------------------------------------
if __name__ == "__main__":
    key = jax.random.PRNGKey(0)
    k_x, k_d, k_l, k_p = jax.random.split(key, 4)

    x = jax.random.normal(k_x, (BATCH, SEQ, RES_CH), jnp.float32)
    diffusion_step = jax.random.normal(k_d, (BATCH, EMB_DIM), jnp.float32)
    local_cond = jax.random.normal(k_l, (BATCH, SEQ, LCOND_DIM), jnp.float32)
    params = init_params(k_p)

    res, skip = residual_block(x, diffusion_step, local_cond, params)
    res = jax.block_until_ready(res)
    skip = jax.block_until_ready(skip)

    res_ref, skip_ref = residual_block_ref(x, diffusion_step, local_cond, params)
    assert res.shape == (BATCH, SEQ, RES_CH) and skip.shape == (BATCH, SEQ, RES_CH)
    assert jnp.allclose(res, res_ref, rtol=1e-4, atol=1e-4)
    assert jnp.allclose(skip, skip_ref, rtol=1e-4, atol=1e-4)

    print("KERNEL_OK")
</pallas_src>

<mosaic_0001>
module attributes {stable_mosaic.version = 11 : i64} {
  func.func @residual_block_kernel(%arg0: i32, %arg1: memref<32x8xf32, #tpu.memory_space<vmem>>, %arg2: memref<32x48xf32, #tpu.memory_space<vmem>>, %arg3: memref<48x8xf32, #tpu.memory_space<vmem>>, %arg4: memref<1x8xf32, #tpu.memory_space<vmem>>, %arg5: memref<3x8x8xf32, #tpu.memory_space<vmem>>, %arg6: memref<1x8xf32, #tpu.memory_space<vmem>>, %arg7: memref<3x8x8xf32, #tpu.memory_space<vmem>>, %arg8: memref<1x8xf32, #tpu.memory_space<vmem>>, %arg9: memref<8x8xf32, #tpu.memory_space<vmem>>, %arg10: memref<1x8xf32, #tpu.memory_space<vmem>>, %arg11: memref<8x8xf32, #tpu.memory_space<vmem>>, %arg12: memref<1x8xf32, #tpu.memory_space<vmem>>, %arg13: memref<32x8xf32, #tpu.memory_space<vmem>>, %arg14: memref<32x8xf32, #tpu.memory_space<vmem>>) attributes {dimension_semantics = [#tpu.dimension_semantics<arbitrary>], iteration_bounds = array<i64: 1>, scalar_prefetch = 0 : i64, scratch_operands = 0 : i64, tpu.core_type = #tpu.core_type<tc>, window_params = [{pipeline_mode = #tpu.pipeline_mode<synchronous>, transform_indices = @transform_0, window_bounds = array<i64: 32, 8>}, {pipeline_mode = #tpu.pipeline_mode<synchronous>, transform_indices = @transform_1, window_bounds = array<i64: 32, 48>}, {pipeline_mode = #tpu.pipeline_mode<synchronous>, transform_indices = @transform_2, window_bounds = array<i64: 48, 8>}, {pipeline_mode = #tpu.pipeline_mode<synchronous>, transform_indices = @transform_3, window_bounds = array<i64: 1, 8>}, {pipeline_mode = #tpu.pipeline_mode<synchronous>, transform_indices = @transform_4, window_bounds = array<i64: 3, 8, 8>}, {pipeline_mode = #tpu.pipeline_mode<synchronous>, transform_indices = @transform_5, window_bounds = array<i64: 1, 8>}, {pipeline_mode = #tpu.pipeline_mode<synchronous>, transform_indices = @transform_6, window_bounds = array<i64: 3, 8, 8>}, {pipeline_mode = #tpu.pipeline_mode<synchronous>, transform_indices = @transform_7, window_bounds = array<i64: 1, 8>}, {pipeline_mode = #tpu.pipeline_mode<synchronous>, transform_indices = @transform_8, window_bounds = array<i64: 8, 8>}, {pipeline_mode = #tpu.pipeline_mode<synchronous>, transform_indices = @transform_9, window_bounds = array<i64: 1, 8>}, {pipeline_mode = #tpu.pipeline_mode<synchronous>, transform_indices = @transform_10, window_bounds = array<i64: 8, 8>}, {pipeline_mode = #tpu.pipeline_mode<synchronous>, transform_indices = @transform_11, window_bounds = array<i64: 1, 8>}, {pipeline_mode = #tpu.pipeline_mode<synchronous>, transform_indices = @transform_12, window_bounds = array<i64: 32, 8>}, {pipeline_mode = #tpu.pipeline_mode<synchronous>, transform_indices = @transform_13, window_bounds = array<i64: 32, 8>}]} {
    %c0 = arith.constant 0 : index
    %c0_0 = arith.constant 0 : index
    %0 = vector.load %arg1[%c0, %c0_0] : memref<32x8xf32, #tpu.memory_space<vmem>>, vector<32x8xf32>
    %c0_1 = arith.constant 0 : index
    %c0_2 = arith.constant 0 : index
    %1 = vector.load %arg2[%c0_1, %c0_2] : memref<32x48xf32, #tpu.memory_space<vmem>>, vector<32x48xf32>
    %c0_3 = arith.constant 0 : index
    %c0_4 = arith.constant 0 : index
    %2 = vector.load %arg3[%c0_3, %c0_4] : memref<48x8xf32, #tpu.memory_space<vmem>>, vector<48x8xf32>
    %cst = arith.constant dense<0.000000e+00> : vector<32x8xf32>
    %3 = tpu.matmul %1, %2, %cst {dimension_numbers = #tpu.dot_dimension_numbers<[1], [0], [0], [1], [0, 0, 1, 1], [], []>} : vector<32x48xf32>, vector<48x8xf32>, vector<32x8xf32> -> vector<32x8xf32>
    %4 = arith.addf %0, %3 : vector<32x8xf32>
    %c0_5 = arith.constant 0 : index
    %c0_6 = arith.constant 0 : index
    %5 = vector.load %arg4[%c0_5, %c0_6] : memref<1x8xf32, #tpu.memory_space<vmem>>, vector<1x8xf32>
    %6 = vector.broadcast %5 : vector<1x8xf32> to vector<32x8xf32>
    %7 = arith.addf %4, %6 : vector<32x8xf32>
    %8 = tpu.iota {dimensions = array<i32: 0>} : vector<32x1xi32>
    %c16_i32 = arith.constant 16 : i32
    %c0_i32 = arith.constant 0 : i32
    %9 = arith.cmpi eq, %c16_i32, %c0_i32 : i32
    %c1_i32 = arith.constant 1 : i32
    %10 = arith.select %9, %c1_i32, %c16_i32 : i32
    %11 = vector.broadcast %10 : i32 to vector<32x1xi32>
    %12 = arith.remsi %8, %11 : vector<32x1xi32>
    %c0_i32_7 = arith.constant 0 : i32
    %13 = vector.broadcast %c0_i32_7 : i32 to vector<32x1xi32>
    %14 = arith.cmpi ne, %12, %13 : vector<32x1xi32>
    %c0_i32_8 = arith.constant 0 : i32
    %15 = vector.broadcast %c0_i32_8 : i32 to vector<32x1xi32>
    %16 = arith.cmpi slt, %12, %15 : vector<32x1xi32>
    %c0_i32_9 = arith.constant 0 : i32
    %17 = arith.cmpi slt, %10, %c0_i32_9 : i32
    %18 = vector.broadcast %17 : i1 to vector<32x1xi1>
    %19 = vector.broadcast %18 : vector<32x1xi1> to vector<32x1xi1>
    %20 = arith.xori %16, %19 : vector<32x1xi1>
    %21 = arith.andi %20, %14 : vector<32x1xi1>
    %22 = vector.broadcast %10 : i32 to vector<32x1xi32>
    %23 = arith.addi %12, %22 : vector<32x1xi32>
    %24 = arith.select %21, %23, %12 : vector<32x1xi1>, vector<32x1xi32>
    %c2_i32 = arith.constant 2 : i32
    %25 = vector.broadcast %c2_i32 : i32 to vector<32x1xi32>
    %26 = arith.cmpi sge, %24, %25 : vector<32x1xi32>
    %c2_i32_10 = arith.constant 2 : i32
    %27 = tpu.dynamic_rotate %7 by %c2_i32_10 dim 0 : vector<32x8xf32>, i32 -> vector<32x8xf32>
    %cst_11 = arith.constant 0.000000e+00 : f32
    %28 = vector.shape_cast %26 : vector<32x1xi1> to vector<32x1xi1>
    %29 = vector.broadcast %28 : vector<32x1xi1> to vector<32x8xi1>
    %30 = vector.broadcast %cst_11 : f32 to vector<32x8xf32>
    %31 = arith.select %29, %27, %30 : vector<32x8xi1>, vector<32x8xf32>
    %c14_i32 = arith.constant 14 : i32
    %32 = vector.broadcast %c14_i32 : i32 to vector<32x1xi32>
    %33 = arith.cmpi slt, %24, %32 : vector<32x1xi32>
    %c30_i32 = arith.constant 30 : i32
    %34 = tpu.dynamic_rotate %7 by %c30_i32 dim 0 : vector<32x8xf32>, i32 -> vector<32x8xf32>
    %cst_12 = arith.constant 0.000000e+00 : f32
    %35 = vector.shape_cast %33 : vector<32x1xi1> to vector<32x1xi1>
    %36 = vector.broadcast %35 : vector<32x1xi1> to vector<32x8xi1>
    %37 = vector.broadcast %cst_12 : f32 to vector<32x8xf32>
    %38 = arith.select %36, %34, %37 : vector<32x8xi1>, vector<32x8xf32>
    %c0_13 = arith.constant 0 : index
    %c0_14 = arith.constant 0 : index
    %c0_15 = arith.constant 0 : index
    %39 = vector.load %arg5[%c0_13, %c0_14, %c0_15] : memref<3x8x8xf32, #tpu.memory_space<vmem>>, vector<1x8x8xf32>
    %40 = vector.shape_cast %39 : vector<1x8x8xf32> to vector<8x8xf32>
    %cst_16 = arith.constant dense<0.000000e+00> : vector<32x8xf32>
    %41 = tpu.matmul %31, %40, %cst_16 {dimension_numbers = #tpu.dot_dimension_numbers<[1], [0], [0], [1], [0, 0, 1, 1], [], []>} : vector<32x8xf32>, vector<8x8xf32>, vector<32x8xf32> -> vector<32x8xf32>
    %c1 = arith.constant 1 : index
    %c0_17 = arith.constant 0 : index
    %c0_18 = arith.constant 0 : index
    %42 = vector.load %arg5[%c1, %c0_17, %c0_18] : memref<3x8x8xf32, #tpu.memory_space<vmem>>, vector<1x8x8xf32>
    %43 = vector.shape_cast %42 : vector<1x8x8xf32> to vector<8x8xf32>
    %cst_19 = arith.constant dense<0.000000e+00> : vector<32x8xf32>
    %44 = tpu.matmul %7, %43, %cst_19 {dimension_numbers = #tpu.dot_dimension_numbers<[1], [0], [0], [1], [0, 0, 1, 1], [], []>} : vector<32x8xf32>, vector<8x8xf32>, vector<32x8xf32> -> vector<32x8xf32>
    %45 = arith.addf %41, %44 : vector<32x8xf32>
    %c2 = arith.constant 2 : index
    %c0_20 = arith.constant 0 : index
    %c0_21 = arith.constant 0 : index
    %46 = vector.load %arg5[%c2, %c0_20, %c0_21] : memref<3x8x8xf32, #tpu.memory_space<vmem>>, vector<1x8x8xf32>
    %47 = vector.shape_cast %46 : vector<1x8x8xf32> to vector<8x8xf32>
    %cst_22 = arith.constant dense<0.000000e+00> : vector<32x8xf32>
    %48 = tpu.matmul %38, %47, %cst_22 {dimension_numbers = #tpu.dot_dimension_numbers<[1], [0], [0], [1], [0, 0, 1, 1], [], []>} : vector<32x8xf32>, vector<8x8xf32>, vector<32x8xf32> -> vector<32x8xf32>
    %49 = arith.addf %45, %48 : vector<32x8xf32>
    %c0_23 = arith.constant 0 : index
    %c0_24 = arith.constant 0 : index
    %50 = vector.load %arg6[%c0_23, %c0_24] : memref<1x8xf32, #tpu.memory_space<vmem>>, vector<1x8xf32>
    %51 = vector.broadcast %50 : vector<1x8xf32> to vector<32x8xf32>
    %52 = arith.addf %49, %51 : vector<32x8xf32>
    %c0_25 = arith.constant 0 : index
    %c0_26 = arith.constant 0 : index
    %c0_27 = arith.constant 0 : index
    %53 = vector.load %arg7[%c0_25, %c0_26, %c0_27] : memref<3x8x8xf32, #tpu.memory_space<vmem>>, vector<1x8x8xf32>
    %54 = vector.shape_cast %53 : vector<1x8x8xf32> to vector<8x8xf32>
    %cst_28 = arith.constant dense<0.000000e+00> : vector<32x8xf32>
    %55 = tpu.matmul %31, %54, %cst_28 {dimension_numbers = #tpu.dot_dimension_numbers<[1], [0], [0], [1], [0, 0, 1, 1], [], []>} : vector<32x8xf32>, vector<8x8xf32>, vector<32x8xf32> -> vector<32x8xf32>
    %c1_29 = arith.constant 1 : index
    %c0_30 = arith.constant 0 : index
    %c0_31 = arith.constant 0 : index
    %56 = vector.load %arg7[%c1_29, %c0_30, %c0_31] : memref<3x8x8xf32, #tpu.memory_space<vmem>>, vector<1x8x8xf32>
    %57 = vector.shape_cast %56 : vector<1x8x8xf32> to vector<8x8xf32>
    %cst_32 = arith.constant dense<0.000000e+00> : vector<32x8xf32>
    %58 = tpu.matmul %7, %57, %cst_32 {dimension_numbers = #tpu.dot_dimension_numbers<[1], [0], [0], [1], [0, 0, 1, 1], [], []>} : vector<32x8xf32>, vector<8x8xf32>, vector<32x8xf32> -> vector<32x8xf32>
    %59 = arith.addf %55, %58 : vector<32x8xf32>
    %c2_33 = arith.constant 2 : index
    %c0_34 = arith.constant 0 : index
    %c0_35 = arith.constant 0 : index
    %60 = vector.load %arg7[%c2_33, %c0_34, %c0_35] : memref<3x8x8xf32, #tpu.memory_space<vmem>>, vector<1x8x8xf32>
    %61 = vector.shape_cast %60 : vector<1x8x8xf32> to vector<8x8xf32>
    %cst_36 = arith.constant dense<0.000000e+00> : vector<32x8xf32>
    %62 = tpu.matmul %38, %61, %cst_36 {dimension_numbers = #tpu.dot_dimension_numbers<[1], [0], [0], [1], [0, 0, 1, 1], [], []>} : vector<32x8xf32>, vector<8x8xf32>, vector<32x8xf32> -> vector<32x8xf32>
    %63 = arith.addf %59, %62 : vector<32x8xf32>
    %c0_37 = arith.constant 0 : index
    %c0_38 = arith.constant 0 : index
    %64 = vector.load %arg8[%c0_37, %c0_38] : memref<1x8xf32, #tpu.memory_space<vmem>>, vector<1x8xf32>
    %65 = vector.broadcast %64 : vector<1x8xf32> to vector<32x8xf32>
    %66 = arith.addf %63, %65 : vector<32x8xf32>
    %67 = arith.negf %52 : vector<32x8xf32>
    %68 = math.exp %67 : vector<32x8xf32>
    %cst_39 = arith.constant 1.000000e+00 : f32
    %69 = vector.broadcast %cst_39 : f32 to vector<32x8xf32>
    %70 = arith.addf %69, %68 : vector<32x8xf32>
    %71 = arith.divf %69, %70 : vector<32x8xf32>
    %72 = math.tanh %66 : vector<32x8xf32>
    %73 = arith.mulf %71, %72 : vector<32x8xf32>
    %c0_40 = arith.constant 0 : index
    %c0_41 = arith.constant 0 : index
    %74 = vector.load %arg9[%c0_40, %c0_41] : memref<8x8xf32, #tpu.memory_space<vmem>>, vector<8x8xf32>
    %cst_42 = arith.constant dense<0.000000e+00> : vector<32x8xf32>
    %75 = tpu.matmul %73, %74, %cst_42 {dimension_numbers = #tpu.dot_dimension_numbers<[1], [0], [0], [1], [0, 0, 1, 1], [], []>} : vector<32x8xf32>, vector<8x8xf32>, vector<32x8xf32> -> vector<32x8xf32>
    %76 = arith.addf %0, %75 : vector<32x8xf32>
    %c0_43 = arith.constant 0 : index
    %c0_44 = arith.constant 0 : index
    %77 = vector.load %arg10[%c0_43, %c0_44] : memref<1x8xf32, #tpu.memory_space<vmem>>, vector<1x8xf32>
    %78 = vector.broadcast %77 : vector<1x8xf32> to vector<32x8xf32>
    %79 = arith.addf %76, %78 : vector<32x8xf32>
    %cst_45 = arith.constant 0.707106769 : f32
    %80 = vector.broadcast %cst_45 : f32 to vector<32x8xf32>
    %81 = arith.mulf %79, %80 : vector<32x8xf32>
    %c0_46 = arith.constant 0 : index
    %c0_47 = arith.constant 0 : index
    %82 = vector.load %arg13[%c0_46, %c0_47] : memref<32x8xf32, #tpu.memory_space<vmem>>, vector<32x8xf32>
    tpu.vector_store %arg13[%c0_46, %c0_47], %81 {strides = array<i32>} : memref<32x8xf32, #tpu.memory_space<vmem>>, vector<32x8xf32>,
    %c0_48 = arith.constant 0 : index
    %c0_49 = arith.constant 0 : index
    %83 = vector.load %arg11[%c0_48, %c0_49] : memref<8x8xf32, #tpu.memory_space<vmem>>, vector<8x8xf32>
    %cst_50 = arith.constant dense<0.000000e+00> : vector<32x8xf32>
    %84 = tpu.matmul %73, %83, %cst_50 {dimension_numbers = #tpu.dot_dimension_numbers<[1], [0], [0], [1], [0, 0, 1, 1], [], []>} : vector<32x8xf32>, vector<8x8xf32>, vector<32x8xf32> -> vector<32x8xf32>
    %c0_51 = arith.constant 0 : index
    %c0_52 = arith.constant 0 : index
    %85 = vector.load %arg12[%c0_51, %c0_52] : memref<1x8xf32, #tpu.memory_space<vmem>>, vector<1x8xf32>
    %86 = vector.broadcast %85 : vector<1x8xf32> to vector<32x8xf32>
    %87 = arith.addf %84, %86 : vector<32x8xf32>
    %c0_53 = arith.constant 0 : index
    %c0_54 = arith.constant 0 : index
    %88 = vector.load %arg14[%c0_53, %c0_54] : memref<32x8xf32, #tpu.memory_space<vmem>>, vector<32x8xf32>
    tpu.vector_store %arg14[%c0_53, %c0_54], %87 {strides = array<i32>} : memref<32x8xf32, #tpu.memory_space<vmem>>, vector<32x8xf32>,
    return
  }
  func.func @transform_0(%arg0: i32) -> (i32, i32) {
    %c0_i32 = arith.constant 0 : i32
    %c0_i32_0 = arith.constant 0 : i32
    %c0_i32_1 = arith.constant 0 : i32
    return %c0_i32, %c0_i32_0 : i32, i32
  }
  func.func @transform_1(%arg0: i32) -> (i32, i32) {
    %c0_i32 = arith.constant 0 : i32
    %c0_i32_0 = arith.constant 0 : i32
    %c0_i32_1 = arith.constant 0 : i32
    return %c0_i32, %c0_i32_0 : i32, i32
  }
  func.func @transform_2(%arg0: i32) -> (i32, i32) {
    %c0_i32 = arith.constant 0 : i32
    %c0_i32_0 = arith.constant 0 : i32
    %c0_i32_1 = arith.constant 0 : i32
    return %c0_i32, %c0_i32_0 : i32, i32
  }
  func.func @transform_3(%arg0: i32) -> (i32, i32) {
    %c0_i32 = arith.constant 0 : i32
    %c0_i32_0 = arith.constant 0 : i32
    %c0_i32_1 = arith.constant 0 : i32
    return %c0_i32, %c0_i32_0 : i32, i32
  }
  func.func @transform_4(%arg0: i32) -> (i32, i32, i32) {
    %c0_i32 = arith.constant 0 : i32
    %c0_i32_0 = arith.constant 0 : i32
    %c0_i32_1 = arith.constant 0 : i32
    %c0_i32_2 = arith.constant 0 : i32
    return %c0_i32, %c0_i32_0, %c0_i32_1 : i32, i32, i32
  }
  func.func @transform_5(%arg0: i32) -> (i32, i32) {
    %c0_i32 = arith.constant 0 : i32
    %c0_i32_0 = arith.constant 0 : i32
    %c0_i32_1 = arith.constant 0 : i32
    return %c0_i32, %c0_i32_0 : i32, i32
  }
  func.func @transform_6(%arg0: i32) -> (i32, i32, i32) {
    %c0_i32 = arith.constant 0 : i32
    %c0_i32_0 = arith.constant 0 : i32
    %c0_i32_1 = arith.constant 0 : i32
    %c0_i32_2 = arith.constant 0 : i32
    return %c0_i32, %c0_i32_0, %c0_i32_1 : i32, i32, i32
  }
  func.func @transform_7(%arg0: i32) -> (i32, i32) {
    %c0_i32 = arith.constant 0 : i32
    %c0_i32_0 = arith.constant 0 : i32
    %c0_i32_1 = arith.constant 0 : i32
    return %c0_i32, %c0_i32_0 : i32, i32
  }
  func.func @transform_8(%arg0: i32) -> (i32, i32) {
    %c0_i32 = arith.constant 0 : i32
    %c0_i32_0 = arith.constant 0 : i32
    %c0_i32_1 = arith.constant 0 : i32
    return %c0_i32, %c0_i32_0 : i32, i32
  }
  func.func @transform_9(%arg0: i32) -> (i32, i32) {
    %c0_i32 = arith.constant 0 : i32
    %c0_i32_0 = arith.constant 0 : i32
    %c0_i32_1 = arith.constant 0 : i32
    return %c0_i32, %c0_i32_0 : i32, i32
  }
  func.func @transform_10(%arg0: i32) -> (i32, i32) {
    %c0_i32 = arith.constant 0 : i32
    %c0_i32_0 = arith.constant 0 : i32
    %c0_i32_1 = arith.constant 0 : i32
    return %c0_i32, %c0_i32_0 : i32, i32
  }
  func.func @transform_11(%arg0: i32) -> (i32, i32) {
    %c0_i32 = arith.constant 0 : i32
    %c0_i32_0 = arith.constant 0 : i32
    %c0_i32_1 = arith.constant 0 : i32
    return %c0_i32, %c0_i32_0 : i32, i32
  }
  func.func @transform_12(%arg0: i32) -> (i32, i32) {
    %c0_i32 = arith.constant 0 : i32
    %c0_i32_0 = arith.constant 0 : i32
    %c0_i32_1 = arith.constant 0 : i32
    return %c0_i32, %c0_i32_0 : i32, i32
  }
  func.func @transform_13(%arg0: i32) -> (i32, i32) {
    %c0_i32 = arith.constant 0 : i32
    %c0_i32_0 = arith.constant 0 : i32
    %c0_i32_1 = arith.constant 0 : i32
    return %c0_i32, %c0_i32_0 : i32, i32
  }
}

</mosaic_0001>

<llo_original>
// kernel: tpu_custom_call.1
$region0: #{tpu_custom_call.1}
  #allocation0 [shape = 'u32[]', space=smem, size = 0x4, offset = 0x4, fixed_abs, tag = 'smem constant byte address 0x4 - core index']
  #allocation1 [shape = 'u32[144,128]{1,0:T(1,128)}', space=vmem, size = 0x12000, scoped, tag = 'internal scratch']
  %s0 = inlined_call_operand.vmem [shape: f32[32,8], index: 0, kind: input, shape index: {}]
  %s1 = inlined_call_operand.vmem [shape: f32[32,48], index: 1, kind: input, shape index: {}]
  %s2 = inlined_call_operand.vmem [shape: f32[48,8], index: 2, kind: input, shape index: {}]
  %s3 = inlined_call_operand.vmem [shape: f32[1,8], index: 3, kind: input, shape index: {}]
  %s4 = inlined_call_operand.vmem [shape: f32[3,8,8], index: 4, kind: input, shape index: {}]
  %s5 = inlined_call_operand.vmem [shape: f32[1,8], index: 5, kind: input, shape index: {}]
  %s6 = inlined_call_operand.vmem [shape: f32[3,8,8], index: 6, kind: input, shape index: {}]
  %s7 = inlined_call_operand.vmem [shape: f32[1,8], index: 7, kind: input, shape index: {}]
  %s8 = inlined_call_operand.vmem [shape: f32[8,8], index: 8, kind: input, shape index: {}]
  %s9 = inlined_call_operand.vmem [shape: f32[1,8], index: 9, kind: input, shape index: {}]
  %s10 = inlined_call_operand.vmem [shape: f32[8,8], index: 10, kind: input, shape index: {}]
  %s11 = inlined_call_operand.vmem [shape: f32[1,8], index: 11, kind: input, shape index: {}]
  %s12 = inlined_call_operand.vmem [shape: f32[32,8], index: 12, kind: output, shape index: {0}]
  %s13 = inlined_call_operand.vmem [shape: f32[32,8], index: 13, kind: output, shape index: {1}]
  %14 = xla_tuple %s12, %s13
  %s15 = sld [smem:[#allocation0]]
  $region66: #{tpu_custom_call.1} parent=0
    _
  %s17 = ssub.s32 1, %s15
  %s18 = scalar_select 0, %s17, %s15
  // Predicated region
  $region2: #{tpu_custom_call.1} parent=0 // pred_check
    _
  $region3: #{tpu_custom_call.1} parent=0 // pred_check_branch
    %20 = sbr.rel (0) target = $region5
  $region4: #{tpu_custom_call.1} parent=0 // pred_region
    _
  $region5: #{tpu_custom_call.1} parent=0 // pred_fallthru
    _
  // Predicated region
  $region6: #{tpu_custom_call.1} parent=0 // pred_check
    _
  $region7: #{tpu_custom_call.1} parent=0 // pred_check_branch
    %22 = sbr.rel (0) target = $region9
  $region8: #{tpu_custom_call.1} parent=0 // pred_region
    _
  $region9: #{tpu_custom_call.1} parent=0 // pred_fallthru
    _
  // Predicated region
  $region10: #{tpu_custom_call.1} parent=0 // pred_check
    _
  $region11: #{tpu_custom_call.1} parent=0 // pred_check_branch
    %24 = sbr.rel (0) target = $region13
  $region12: #{tpu_custom_call.1} parent=0 // pred_region
    _
  $region13: #{tpu_custom_call.1} parent=0 // pred_fallthru
    _
  // Predicated region
  $region14: #{tpu_custom_call.1} parent=0 // pred_check
    _
  $region15: #{tpu_custom_call.1} parent=0 // pred_check_branch
    %26 = sbr.rel (0) target = $region17
  $region16: #{tpu_custom_call.1} parent=0 // pred_region
    _
  $region17: #{tpu_custom_call.1} parent=0 // pred_fallthru
    _
  // Predicated region
  $region18: #{tpu_custom_call.1} parent=0 // pred_check
    _
  $region19: #{tpu_custom_call.1} parent=0 // pred_check_branch
    %28 = sbr.rel (0) target = $region21
  $region20: #{tpu_custom_call.1} parent=0 // pred_region
    _
  $region21: #{tpu_custom_call.1} parent=0 // pred_fallthru
    _
  // Predicated region
  $region22: #{tpu_custom_call.1} parent=0 // pred_check
    _
  $region23: #{tpu_custom_call.1} parent=0 // pred_check_branch
    %30 = sbr.rel (0) target = $region25
  $region24: #{tpu_custom_call.1} parent=0 // pred_region
    _
  $region25: #{tpu_custom_call.1} parent=0 // pred_fallthru
    _
  // Predicated region
  $region26: #{tpu_custom_call.1} parent=0 // pred_check
    _
  $region27: #{tpu_custom_call.1} parent=0 // pred_check_branch
    %32 = sbr.rel (0) target = $region29
  $region28: #{tpu_custom_call.1} parent=0 // pred_region
    _
  $region29: #{tpu_custom_call.1} parent=0 // pred_fallthru
    _
  // Predicated region
  $region30: #{tpu_custom_call.1} parent=0 // pred_check
    _
  $region31: #{tpu_custom_call.1} parent=0 // pred_check_branch
    %34 = sbr.rel (0) target = $region33
  $region32: #{tpu_custom_call.1} parent=0 // pred_region
    _
  $region33: #{tpu_custom_call.1} parent=0 // pred_fallthru
    _
  // Predicated region
  $region34: #{tpu_custom_call.1} parent=0 // pred_check
    _
  $region35: #{tpu_custom_call.1} parent=0 // pred_check_branch
    %36 = sbr.rel (0) target = $region37
  $region36: #{tpu_custom_call.1} parent=0 // pred_region
    _
  $region37: #{tpu_custom_call.1} parent=0 // pred_fallthru
    _
  // Predicated region
  $region38: #{tpu_custom_call.1} parent=0 // pred_check
    _
  $region39: #{tpu_custom_call.1} parent=0 // pred_check_branch
    %38 = sbr.rel (0) target = $region41
  $region40: #{tpu_custom_call.1} parent=0 // pred_region
    _
  $region41: #{tpu_custom_call.1} parent=0 // pred_fallthru
    _
  // Predicated region
  $region42: #{tpu_custom_call.1} parent=0 // pred_check
    _
  $region43: #{tpu_custom_call.1} parent=0 // pred_check_branch
    %40 = sbr.rel (0) target = $region45
  $region44: #{tpu_custom_call.1} parent=0 // pred_region
    _
  $region45: #{tpu_custom_call.1} parent=0 // pred_fallthru
    _
  // Predicated region
  $region46: #{tpu_custom_call.1} parent=0 // pred_check
    _
  $region47: #{tpu_custom_call.1} parent=0 // pred_check_branch
    %42 = sbr.rel (0) target = $region49
  $region48: #{tpu_custom_call.1} parent=0 // pred_region
    _
  $region49: #{tpu_custom_call.1} parent=0 // pred_fallthru
    _
  %v43 = vld [vmem:[%s0] sm:$0xff]
  %v44 = vld [vmem:[%s0 + $0x8] sm:$0xff]
  %v45 = vld [vmem:[%s0 + $0x10] sm:$0xff]
  %v46 = vld [vmem:[%s0 + $0x18] sm:$0xff]
  %v47 = vld [vmem:[%s1] sm:$0xff]
  %v48 = vld [vmem:[%s1 + $0x8] sm:$0xff]
  %v49 = vld [vmem:[%s1 + $0x10] sm:$0xff]
  %v50 = vld [vmem:[%s1 + $0x18] sm:$0xff]
  %v51 = vld [vmem:[%s2] sm:$0xff]
  %v52 = vld [vmem:[%s2 + $0x8] sm:$0xff]
  %v53 = vld [vmem:[%s2 + $0x10] sm:$0xff]
  %v54 = vld [vmem:[%s2 + $0x18] sm:$0xff]
  %v55 = vld [vmem:[%s2 + $0x20] sm:$0xff]
  %v56 = vld [vmem:[%s2 + $0x28] sm:$0xff]
  %vm57 = vcmask 392192
  %v59 = vsel %vm57, %v47, 0
  %v62 = vsel %vm57, %v48, 0
  %v65 = vsel %vm57, %v49, 0
  %v68 = vsel %vm57, %v50, 0
  %70 = vmatprep.subr.mxu0 0.0
  %71 = vmatpush1.msra.mxu0 %v51
  %72 = vmatprep.subr.mxu0 0.0
  %73 = vmatpush1.msra.mxu0 %v52
  %74 = vmatprep.subr.mxu0 0.0
  %75 = vmatpush1.msra.mxu0 %v53
  %76 = vmatprep.subr.mxu0 0.0
  %77 = vmatpush1.msra.mxu0 %v54
  %78 = vmatprep.subr.mxu0 0.0
  %79 = vmatpush1.msra.mxu0 %v55
  %80 = vmatprep.subr.mxu0 0.0
  %81 = vmatpush1.msra.mxu0 %v56
  %82 = vmatprep.subr.mxu0 0.0
  %83 = vmatpush1.msra.mxu0 0.0
  %84 = vmatprep.subr.mxu0 0.0
  %85 = vmatpush1.msra.mxu0 0.0
  %86 = vmatprep.subr.mxu0 0.0
  %87 = vmatpush1.msra.mxu0 0.0
  %88 = vmatprep.subr.mxu0 0.0
  %89 = vmatpush1.msra.mxu0 0.0
  %90 = vmatprep.subr.mxu0 0.0
  %91 = vmatpush1.msra.mxu0 0.0
  %92 = vmatprep.subr.mxu0 0.0
  %93 = vmatpush1.msra.mxu0 0.0
  %94 = vmatprep.subr.mxu0 0.0
  %95 = vmatpush1.msra.mxu0 0.0
  %96 = vmatprep.subr.mxu0 0.0
  %97 = vmatpush1.msra.mxu0 0.0
  %98 = vmatprep.subr.mxu0 0.0
  %99 = vmatpush1.msra.mxu0 0.0
  %100 = vmatprep.subr.mxu0 0.0
  %101 = vmatpush1.msra.mxu0 0.0
  %102 = vmatprep.subr.mxu0 0.0
  %103 = vmatpush1.msra.mxu0 0.0
  %104 = vmatprep.subr.mxu0 0.0
  %105 = vmatpush1.msra.mxu0 0.0
  %106 = vmatprep.subr.mxu0 0.0
  %107 = vmatpush1.msra.mxu0 0.0
  %108 = vmatprep.subr.mxu0 0.0
  %109 = vmatpush1.msra.mxu0 0.0
  %110 = vmatprep.subr.mxu0 0.0
  %111 = vmatpush1.msra.mxu0 0.0
  %112 = vmatprep.subr.mxu0 0.0
  %113 = vmatpush1.msra.mxu0 0.0
  %114 = vmatprep.subr.mxu0 0.0
  %115 = vmatpush1.msra.mxu0 0.0
  %116 = vmatprep.subr.mxu0 0.0
  %117 = vmatpush1.msra.mxu0 0.0
  %118 = vmatprep.subr.mxu0 0.0
  %119 = vmatpush1.msra.mxu0 0.0
  %120 = vmatprep.subr.mxu0 0.0
  %121 = vmatpush1.msra.mxu0 0.0
  %122 = vmatprep.subr.mxu0 0.0
  %123 = vmatpush1.msra.mxu0 0.0
  %124 = vmatprep.subr.mxu0 0.0
  %125 = vmatpush1.msra.mxu0 0.0
  %126 = vmatprep.subr.mxu0 0.0
  %127 = vmatpush1.msra.mxu0 0.0
  %128 = vmatprep.subr.mxu0 0.0
  %129 = vmatpush1.msra.mxu0 0.0
  %130 = vmatprep.subr.mxu0 0.0
  %131 = vmatpush1.msra.mxu0 0.0
  %132 = vmatprep.subr.mxu0 0.0
  %133 = vmatpush1.msra.mxu0 0.0
  %134 = vmatprep.mubr.f32.mxu0 0.0
  %135 = vmatmul.mubr.f32.gmra.mrb[0].mxu0 %v59
  %v136 = vpop.f32.mrb[0].mxu0
  %v137 = vadd.f32 0.0, %v136
  %v138 = vpop.f32.mrb[0].mxu0
  %139 = vmatprep.mubr.f32.mxu0 0.0
  %140 = vmatmul.mubr.f32.gmra.mrb[0].mxu0 %v62
  %v141 = vpop.f32.mrb[0].mxu0
  %v142 = vadd.f32 0.0, %v141
  %v143 = vpop.f32.mrb[0].mxu0
  %144 = vmatprep.mubr.f32.mxu0 0.0
  %145 = vmatmul.mubr.f32.gmra.mrb[0].mxu0 %v65
  %v146 = vpop.f32.mrb[0].mxu0
  %v147 = vadd.f32 0.0, %v146
  %v148 = vpop.f32.mrb[0].mxu0
  %149 = vmatprep.mubr.f32.mxu0 0.0
  %150 = vmatmul.mubr.f32.gmra.mrb[0].mxu0 %v68
  %v151 = vpop.f32.mrb[0].mxu0
  %v152 = vadd.f32 0.0, %v151
  %v153 = vpop.f32.mrb[0].mxu0
  %154 = vdwg.mxu0
  %v155 = vadd.f32 %v43, %v137
  %v156 = vadd.f32 %v44, %v142
  %v157 = vadd.f32 %v45, %v147
  %v158 = vadd.f32 %v46, %v152
  %v159 = vld [vmem:[%s3] sm:$0x1]
  %v161 = vlaneseq
  %v162 = vshrl.u32 %v161, 7
  %v163 = vsub.s32 0, %v162
  %v164 = vrot.slane %v159, %v163
  %v166 = vadd.f32 %v155, %v164
  %v167 = vadd.f32 %v156, %v164
  %v168 = vadd.f32 %v157, %v164
  %v169 = vadd.f32 %v158, %v164
  %v170 = vlaneseq
  %v171 = vshrl.u32 %v170, 7
  %v172 = vadd.s32 %v171, 8
  %v173 = vadd.s32 %v171, 16
  %v174 = vadd.s32 %v171, 24
  %vm175 = vcmp.lt.s32.totalorder %v171, 0
  %v176 = vsub.s32 0, %v171
  %v177 = vsel %vm175, %v176, %v171
  %v178 = vshrl.u32 %v177, 4
  %v179 = vand.u32 %v177, 15
  %v180 = vsub.s32 0, %v179
  %v181 = vsel %vm175, %v180, %v179
  %vm182 = vcmp.lt.s32.totalorder %v172, 0
  %v183 = vsub.s32 0, %v172
  %v184 = vsel %vm182, %v183, %v172
  %v185 = vshrl.u32 %v184, 4
  %v186 = vand.u32 %v184, 15
  %v187 = vsub.s32 0, %v186
  %v188 = vsel %vm182, %v187, %v186
  %vm189 = vcmp.lt.s32.totalorder %v173, 0
  %v190 = vsub.s32 0, %v173
  %v191 = vsel %vm189, %v190, %v173
  %v192 = vshrl.u32 %v191, 4
  %v193 = vand.u32 %v191, 15
  %v194 = vsub.s32 0, %v193
  %v195 = vsel %vm189, %v194, %v193
  %vm196 = vcmp.lt.s32.totalorder %v174, 0
  %v197 = vsub.s32 0, %v174
  %v198 = vsel %vm196, %v197, %v174
  %v199 = vshrl.u32 %v198, 4
  %v200 = vand.u32 %v198, 15
  %v201 = vsub.s32 0, %v200
  %v202 = vsel %vm196, %v201, %v200
  %vm203 = vcmp.ne.s32.totalorder %v181, 0
  %vm204 = vcmp.ne.s32.totalorder %v188, 0
  %vm205 = vcmp.ne.s32.totalorder %v195, 0
  %vm206 = vcmp.ne.s32.totalorder %v202, 0
  %vm207 = vcmp.lt.s32.totalorder %v181, 0
  %vm208 = vcmp.lt.s32.totalorder %v188, 0
  %vm209 = vcmp.lt.s32.totalorder %v195, 0
  %vm210 = vcmp.lt.s32.totalorder %v202, 0
  %vm211 = vmand %vm207, %vm203
  %vm212 = vmand %vm208, %vm204
  %vm213 = vmand %vm209, %vm205
  %vm214 = vmand %vm210, %vm206
  %v215 = vadd.s32 %v181, 16
  %v216 = vadd.s32 %v188, 16
  %v217 = vadd.s32 %v195, 16
  %v218 = vadd.s32 %v202, 16
  %v219 = vsel %vm211, %v215, %v181
  %v220 = vsel %vm212, %v216, %v188
  %v221 = vsel %vm213, %v217, %v195
  %v222 = vsel %vm214, %v218, %v202
  %vm223 = vcmp.ge.s32.totalorder %v219, 2
  %vm224 = vcmp.ge.s32.totalorder %v220, 2
  %vm225 = vcmp.ge.s32.totalorder %v221, 2
  %vm226 = vcmp.ge.s32.totalorder %v222, 2
  %v227 = vrot.slane %v166, 6
  %v228 = vrot.slane %v167, 6
  %v229 = vrot.slane %v168, 6
  %v230 = vrot.slane %v169, 6
  %vm231 = vcmp.lt.s32.totalorder %v171, 2
  %v232 = vsel %vm231, %v229, %v230
  %v233 = vsel %vm231, %v228, %v229
  %v234 = vsel %vm231, %v227, %v228
  %v235 = vsel %vm231, %v230, %v227
  %v236 = vsel %vm223, 1, 0
  %v237 = vsel %vm224, 1, 0
  %v238 = vsel %vm225, 1, 0
  %v239 = vsel %vm226, 1, 0
  %vm240 = vcmp.eq.s32.totalorder %v236, 1
  %vm241 = vcmp.eq.s32.totalorder %v237, 1
  %vm242 = vcmp.eq.s32.totalorder %v238, 1
  %vm243 = vcmp.eq.s32.totalorder %v239, 1
  %v244 = vsel %vm240, %v235, 0.0
  %v245 = vsel %vm241, %v234, 0.0
  %v246 = vsel %vm242, %v233, 0.0
  %v247 = vsel %vm243, %v232, 0.0
  %vm248 = vcmp.lt.s32.totalorder %v219, 14
  %vm249 = vcmp.lt.s32.totalorder %v220, 14
  %vm250 = vcmp.lt.s32.totalorder %v221, 14
  %vm251 = vcmp.lt.s32.totalorder %v222, 14
  %v252 = vrot.slane %v166, 2
  %v253 = vrot.slane %v167, 2
  %v254 = vrot.slane %v168, 2
  %v255 = vrot.slane %v169, 2
  %vm256 = vcmp.lt.s32.totalorder %v171, 6
  %v257 = vsel %vm256, %v254, %v255
  %v258 = vsel %vm256, %v253, %v254
  %v259 = vsel %vm256, %v252, %v253
  %v260 = vsel %vm256, %v255, %v252
  %v261 = vsel %vm248, 1, 0
  %v262 = vsel %vm249, 1, 0
  %v263 = vsel %vm250, 1, 0
  %v264 = vsel %vm251, 1, 0
  %vm265 = vcmp.eq.s32.totalorder %v261, 1
  %vm266 = vcmp.eq.s32.totalorder %v262, 1
  %vm267 = vcmp.eq.s32.totalorder %v263, 1
  %vm268 = vcmp.eq.s32.totalorder %v264, 1
  %v269 = vsel %vm265, %v259, 0.0
  %v270 = vsel %vm266, %v258, 0.0
  %v271 = vsel %vm267, %v257, 0.0
  %v272 = vsel %vm268, %v260, 0.0
  %v273 = vld [vmem:[%s4] sm:$0xff]
  %s274 = scalar_lea.vmem %s4, 8
  %v275 = vld [vmem:[%s274] sm:$0xff]
  %vm276 = vcmask 64512
  %v278 = vsel %vm276, %v166, 0
  %v281 = vsel %vm276, %v167, 0
  %v284 = vsel %vm276, %v168, 0
  %v287 = vsel %vm276, %v169, 0
  %289 = vmatprep.subr.mxu0 0.0
  %290 = vmatpush1.msra.mxu0 %v275
  %291 = vmatprep.subr.mxu0 0.0
  %292 = vmatpush1.msra.mxu0 0.0
  %293 = vmatprep.subr.mxu0 0.0
  %294 = vmatpush1.msra.mxu0 0.0
  %295 = vmatprep.subr.mxu0 0.0
  %296 = vmatpush1.msra.mxu0 0.0
  %297 = vmatprep.subr.mxu0 0.0
  %298 = vmatpush1.msra.mxu0 0.0
  %299 = vmatprep.subr.mxu0 0.0
  %300 = vmatpush1.msra.mxu0 0.0
  %301 = vmatprep.subr.mxu0 0.0
  %302 = vmatpush1.msra.mxu0 0.0
  %303 = vmatprep.subr.mxu0 0.0
  %304 = vmatpush1.msra.mxu0 0.0
  %305 = vmatprep.subr.mxu0 0.0
  %306 = vmatpush1.msra.mxu0 0.0
  %307 = vmatprep.subr.mxu0 0.0
  %308 = vmatpush1.msra.mxu0 0.0
  %309 = vmatprep.subr.mxu0 0.0
  %310 = vmatpush1.msra.mxu0 0.0
  %311 = vmatprep.subr.mxu0 0.0
  %312 = vmatpush1.msra.mxu0 0.0
  %313 = vmatprep.subr.mxu0 0.0
  %314 = vmatpush1.msra.mxu0 0.0
  %315 = vmatprep.subr.mxu0 0.0
  %316 = vmatpush1.msra.mxu0 0.0
  %317 = vmatprep.subr.mxu0 0.0
  %318 = vmatpush1.msra.mxu0 0.0
  %319 = vmatprep.subr.mxu0 0.0
  %320 = vmatpush1.msra.mxu0 0.0
  %321 = vmatprep.subr.mxu0 0.0
  %322 = vmatpush1.msra.mxu0 0.0
  %323 = vmatprep.subr.mxu0 0.0
  %324 = vmatpush1.msra.mxu0 0.0
  %325 = vmatprep.subr.mxu0 0.0
  %326 = vmatpush1.msra.mxu0 0.0
  %327 = vmatprep.subr.mxu0 0.0
  %328 = vmatpush1.msra.mxu0 0.0
  %329 = vmatprep.subr.mxu0 0.0
  %330 = vmatpush1.msra.mxu0 0.0
  %331 = vmatprep.subr.mxu0 0.0
  %332 = vmatpush1.msra.mxu0 0.0
  %333 = vmatprep.subr.mxu0 0.0
  %334 = vmatpush1.msra.mxu0 0.0
  %335 = vmatprep.subr.mxu0 0.0
  %336 = vmatpush1.msra.mxu0 0.0
  %337 = vmatprep.subr.mxu0 0.0
  %338 = vmatpush1.msra.mxu0 0.0
  %339 = vmatprep.subr.mxu0 0.0
  %340 = vmatpush1.msra.mxu0 0.0
  %341 = vmatprep.subr.mxu0 0.0
  %342 = vmatpush1.msra.mxu0 0.0
  %343 = vmatprep.subr.mxu0 0.0
  %344 = vmatpush1.msra.mxu0 0.0
  %345 = vmatprep.subr.mxu0 0.0
  %346 = vmatpush1.msra.mxu0 0.0
  %347 = vmatprep.subr.mxu0 0.0
  %348 = vmatpush1.msra.mxu0 0.0
  %349 = vmatprep.subr.mxu0 0.0
  %350 = vmatpush1.msra.mxu0 0.0
  %351 = vmatprep.subr.mxu0 0.0
  %352 = vmatpush1.msra.mxu0 0.0
  %353 = vmatprep.mubr.f32.mxu0 0.0
  %354 = vmatmul.mubr.f32.gmra.mrb[0].mxu0 %v278
  %v355 = vpop.f32.mrb[0].mxu0
  %v356 = vadd.f32 0.0, %v355
  %v357 = vpop.f32.mrb[0].mxu0
  %358 = vmatprep.mubr.f32.mxu0 0.0
  %359 = vmatmul.mubr.f32.gmra.mrb[0].mxu0 %v281
  %v360 = vpop.f32.mrb[0].mxu0
  %v361 = vadd.f32 0.0, %v360
  %v362 = vpop.f32.mrb[0].mxu0
  %363 = vmatprep.mubr.f32.mxu0 0.0
  %364 = vmatmul.mubr.f32.gmra.mrb[0].mxu0 %v284
  %v365 = vpop.f32.mrb[0].mxu0
  %v366 = vadd.f32 0.0, %v365
  %v367 = vpop.f32.mrb[0].mxu0
  %368 = vmatprep.mubr.f32.mxu0 0.0
  %369 = vmatmul.mubr.f32.gmra.mrb[0].mxu0 %v287
  %v370 = vpop.f32.mrb[0].mxu0
  %v371 = vadd.f32 0.0, %v370
  %v372 = vpop.f32.mrb[0].mxu0
  %373 = vdwg.mxu0
  %v375 = vsel %vm276, %v244, 0
  %v378 = vsel %vm276, %v245, 0
  %v381 = vsel %vm276, %v246, 0
  %v384 = vsel %vm276, %v247, 0
  %386 = vmatprep.subr.mxu0 0.0
  %387 = vmatpush1.msra.mxu0 %v273
  %388 = vmatprep.subr.mxu0 0.0
  %389 = vmatpush1.msra.mxu0 0.0
  %390 = vmatprep.subr.mxu0 0.0
  %391 = vmatpush1.msra.mxu0 0.0
  %392 = vmatprep.subr.mxu0 0.0
  %393 = vmatpush1.msra.mxu0 0.0
  %394 = vmatprep.subr.mxu0 0.0
  %395 = vmatpush1.msra.mxu0 0.0
  %396 = vmatprep.subr.mxu0 0.0
  %397 = vmatpush1.msra.mxu0 0.0
  %398 = vmatprep.subr.mxu0 0.0
  %399 = vmatpush1.msra.mxu0 0.0
  %400 = vmatprep.subr.mxu0 0.0
  %401 = vmatpush1.msra.mxu0 0.0
  %402 = vmatprep.subr.mxu0 0.0
  %403 = vmatpush1.msra.mxu0 0.0
  %404 = vmatprep.subr.mxu0 0.0
  %405 = vmatpush1.msra.mxu0 0.0
  %406 = vmatprep.subr.mxu0 0.0
  %407 = vmatpush1.msra.mxu0 0.0
  %408 = vmatprep.subr.mxu0 0.0
  %409 = vmatpush1.msra.mxu0 0.0
  %410 = vmatprep.subr.mxu0 0.0
  %411 = vmatpush1.msra.mxu0 0.0
  %412 = vmatprep.subr.mxu0 0.0
  %413 = vmatpush1.msra.mxu0 0.0
  %414 = vmatprep.subr.mxu0 0.0
  %415 = vmatpush1.msra.mxu0 0.0
  %416 = vmatprep.subr.mxu0 0.0
  %417 = vmatpush1.msra.mxu0 0.0
  %418 = vmatprep.subr.mxu0 0.0
  %419 = vmatpush1.msra.mxu0 0.0
  %420 = vmatprep.subr.mxu0 0.0
  %421 = vmatpush1.msra.mxu0 0.0
  %422 = vmatprep.subr.mxu0 0.0
  %423 = vmatpush1.msra.mxu0 0.0
  %424 = vmatprep.subr.mxu0 0.0
  %425 = vmatpush1.msra.mxu0 0.0
  %426 = vmatprep.subr.mxu0 0.0
  %427 = vmatpush1.msra.mxu0 0.0
  %428 = vmatprep.subr.mxu0 0.0
  %429 = vmatpush1.msra.mxu0 0.0
  %430 = vmatprep.subr.mxu0 0.0
  %431 = vmatpush1.msra.mxu0 0.0
  %432 = vmatprep.subr.mxu0 0.0
  %433 = vmatpush1.msra.mxu0 0.0
  %434 = vmatprep.subr.mxu0 0.0
  %435 = vmatpush1.msra.mxu0 0.0
  %436 = vmatprep.subr.mxu0 0.0
  %437 = vmatpush1.msra.mxu0 0.0
  %438 = vmatprep.subr.mxu0 0.0
  %439 = vmatpush1.msra.mxu0 0.0
  %440 = vmatprep.subr.mxu0 0.0
  %441 = vmatpush1.msra.mxu0 0.0
  %442 = vmatprep.subr.mxu0 0.0
  %443 = vmatpush1.msra.mxu0 0.0
  %444 = vmatprep.subr.mxu0 0.0
  %445 = vmatpush1.msra.mxu0 0.0
  %446 = vmatprep.subr.mxu0 0.0
  %447 = vmatpush1.msra.mxu0 0.0
  %448 = vmatprep.subr.mxu0 0.0
  %449 = vmatpush1.msra.mxu0 0.0
  %450 = vmatprep.mubr.f32.mxu0 0.0
  %451 = vmatmul.mubr.f32.gmra.mrb[0].mxu0 %v375
  %v452 = vpop.f32.mrb[0].mxu0
  %v453 = vadd.f32 %v356, %v452
  %v454 = vpop.f32.mrb[0].mxu0
  %455 = vmatprep.mubr.f32.mxu0 0.0
  %456 = vmatmul.mubr.f32.gmra.mrb[0].mxu0 %v378
  %v457 = vpop.f32.mrb[0].mxu0
  %v458 = vadd.f32 %v361, %v457
  %v459 = vpop.f32.mrb[0].mxu0
  %460 = vmatprep.mubr.f32.mxu0 0.0
  %461 = vmatmul.mubr.f32.gmra.mrb[0].mxu0 %v381
  %v462 = vpop.f32.mrb[0].mxu0
  %v463 = vadd.f32 %v366, %v462
  %v464 = vpop.f32.mrb[0].mxu0
  %465 = vmatprep.mubr.f32.mxu0 0.0
  %466 = vmatmul.mubr.f32.gmra.mrb[0].mxu0 %v384
  %v467 = vpop.f32.mrb[0].mxu0
  %v468 = vadd.f32 %v371, %v467
  %v469 = vpop.f32.mrb[0].mxu0
  %470 = vdwg.mxu0
  %s471 = scalar_lea.vmem %s4, 16
  %v472 = vld [vmem:[%s471] sm:$0xff]
  %v474 = vsel %vm276, %v269, 0
  %v477 = vsel %vm276, %v270, 0
  %v480 = vsel %vm276, %v271, 0
  %v483 = vsel %vm276, %v272, 0
  %485 = vmatprep.subr.mxu0 0.0
  %486 = vmatpush1.msra.mxu0 %v472
  %487 = vmatprep.subr.mxu0 0.0
  %488 = vmatpush1.msra.mxu0 0.0
  %489 = vmatprep.subr.mxu0 0.0
  %490 = vmatpush1.msra.mxu0 0.0
  %491 = vmatprep.subr.mxu0 0.0
  %492 = vmatpush1.msra.mxu0 0.0
  %493 = vmatprep.subr.mxu0 0.0
  %494 = vmatpush1.msra.mxu0 0.0
  %495 = vmatprep.subr.mxu0 0.0
  %496 = vmatpush1.msra.mxu0 0.0
  %497 = vmatprep.subr.mxu0 0.0
  %498 = vmatpush1.msra.mxu0 0.0
  %499 = vmatprep.subr.mxu0 0.0
  %500 = vmatpush1.msra.mxu0 0.0
  %501 = vmatprep.subr.mxu0 0.0
  %502 = vmatpush1.msra.mxu0 0.0
  %503 = vmatprep.subr.mxu0 0.0
  %504 = vmatpush1.msra.mxu0 0.0
  %505 = vmatprep.subr.mxu0 0.0
  %506 = vmatpush1.msra.mxu0 0.0
  %507 = vmatprep.subr.mxu0 0.0
  %508 = vmatpush1.msra.mxu0 0.0
  %509 = vmatprep.subr.mxu0 0.0
  %510 = vmatpush1.msra.mxu0 0.0
  %511 = vmatprep.subr.mxu0 0.0
  %512 = vmatpush1.msra.mxu0 0.0
  %513 = vmatprep.subr.mxu0 0.0
  %514 = vmatpush1.msra.mxu0 0.0
  %515 = vmatprep.subr.mxu0 0.0
  %516 = vmatpush1.msra.mxu0 0.0
  %517 = vmatprep.subr.mxu0 0.0
  %518 = vmatpush1.msra.mxu0 0.0
  %519 = vmatprep.subr.mxu0 0.0
  %520 = vmatpush1.msra.mxu0 0.0
  %521 = vmatprep.subr.mxu0 0.0
  %522 = vmatpush1.msra.mxu0 0.0
  %523 = vmatprep.subr.mxu0 0.0
  %524 = vmatpush1.msra.mxu0 0.0
  %525 = vmatprep.subr.mxu0 0.0
  %526 = vmatpush1.msra.mxu0 0.0
  %527 = vmatprep.subr.mxu0 0.0
  %528 = vmatpush1.msra.mxu0 0.0
  %529 = vmatprep.subr.mxu0 0.0
  %530 = vmatpush1.msra.mxu0 0.0
  %531 = vmatprep.subr.mxu0 0.0
  %532 = vmatpush1.msra.mxu0 0.0
  %533 = vmatprep.subr.mxu0 0.0
  %534 = vmatpush1.msra.mxu0 0.0
  %535 = vmatprep.subr.mxu0 0.0
  %536 = vmatpush1.msra.mxu0 0.0
  %537 = vmatprep.subr.mxu0 0.0
  %538 = vmatpush1.msra.mxu0 0.0
  %539 = vmatprep.subr.mxu0 0.0
  %540 = vmatpush1.msra.mxu0 0.0
  %541 = vmatprep.subr.mxu0 0.0
  %542 = vmatpush1.msra.mxu0 0.0
  %543 = vmatprep.subr.mxu0 0.0
  %544 = vmatpush1.msra.mxu0 0.0
  %545 = vmatprep.subr.mxu0 0.0
  %546 = vmatpush1.msra.mxu0 0.0
  %547 = vmatprep.subr.mxu0 0.0
  %548 = vmatpush1.msra.mxu0 0.0
  %549 = vmatprep.mubr.f32.mxu0 0.0
  %550 = vmatmul.mubr.f32.gmra.mrb[0].mxu0 %v474
  %v551 = vpop.f32.mrb[0].mxu0
  %v552 = vadd.f32 0.0, %v551
  %v553 = vpop.f32.mrb[0].mxu0
  %554 = vmatprep.mubr.f32.mxu0 0.0
  %555 = vmatmul.mubr.f32.gmra.mrb[0].mxu0 %v477
  %v556 = vpop.f32.mrb[0].mxu0
  %v557 = vadd.f32 0.0, %v556
  %v558 = vpop.f32.mrb[0].mxu0
  %559 = vmatprep.mubr.f32.mxu0 0.0
  %560 = vmatmul.mubr.f32.gmra.mrb[0].mxu0 %v480
  %v561 = vpop.f32.mrb[0].mxu0
  %v562 = vadd.f32 0.0, %v561
  %v563 = vpop.f32.mrb[0].mxu0
  %564 = vmatprep.mubr.f32.mxu0 0.0
  %565 = vmatmul.mubr.f32.gmra.mrb[0].mxu0 %v483
  %v566 = vpop.f32.mrb[0].mxu0
  %v567 = vadd.f32 0.0, %v566
  %v568 = vpop.f32.mrb[0].mxu0
  %569 = vdwg.mxu0
  %v570 = vadd.f32 %v453, %v552
  %v571 = vadd.f32 %v458, %v557
  %v572 = vadd.f32 %v463, %v562
  %v573 = vadd.f32 %v468, %v567
  %v574 = vld [vmem:[%s5] sm:$0x1]
  %v576 = vlaneseq
  %v577 = vshrl.u32 %v576, 7
  %v578 = vsub.s32 0, %v577
  %v579 = vrot.slane %v574, %v578
  %v581 = vadd.f32 %v570, %v579
  %v582 = vadd.f32 %v571, %v579
  %v583 = vadd.f32 %v572, %v579
  %v584 = vadd.f32 %v573, %v579
  %v585 = vld [vmem:[%s6] sm:$0xff]
  %s586 = scalar_lea.vmem %s6, 8
  %v587 = vld [vmem:[%s586] sm:$0xff]
  %588 = vmatprep.subr.mxu0 0.0
  %589 = vmatpush1.msra.mxu0 %v587
  %590 = vmatprep.subr.mxu0 0.0
  %591 = vmatpush1.msra.mxu0 0.0
  %592 = vmatprep.subr.mxu0 0.0
  %593 = vmatpush1.msra.mxu0 0.0
  %594 = vmatprep.subr.mxu0 0.0
  %595 = vmatpush1.msra.mxu0 0.0
  %596 = vmatprep.subr.mxu0 0.0
  %597 = vmatpush1.msra.mxu0 0.0
  %598 = vmatprep.subr.mxu0 0.0
  %599 = vmatpush1.msra.mxu0 0.0
  %600 = vmatprep.subr.mxu0 0.0
  %601 = vmatpush1.msra.mxu0 0.0
  %602 = vmatprep.subr.mxu0 0.0
  %603 = vmatpush1.msra.mxu0 0.0
  %604 = vmatprep.subr.mxu0 0.0
  %605 = vmatpush1.msra.mxu0 0.0
  %606 = vmatprep.subr.mxu0 0.0
  %607 = vmatpush1.msra.mxu0 0.0
  %608 = vmatprep.subr.mxu0 0.0
  %609 = vmatpush1.msra.mxu0 0.0
  %610 = vmatprep.subr.mxu0 0.0
  %611 = vmatpush1.msra.mxu0 0.0
  %612 = vmatprep.subr.mxu0 0.0
  %613 = vmatpush1.msra.mxu0 0.0
  %614 = vmatprep.subr.mxu0 0.0
  %615 = vmatpush1.msra.mxu0 0.0
  %616 = vmatprep.subr.mxu0 0.0
  %617 = vmatpush1.msra.mxu0 0.0
  %618 = vmatprep.subr.mxu0 0.0
  %619 = vmatpush1.msra.mxu0 0.0
  %620 = vmatprep.subr.mxu0 0.0
  %621 = vmatpush1.msra.mxu0 0.0
  %622 = vmatprep.subr.mxu0 0.0
  %623 = vmatpush1.msra.mxu0 0.0
  %624 = vmatprep.subr.mxu0 0.0
  %625 = vmatpush1.msra.mxu0 0.0
  %626 = vmatprep.subr.mxu0 0.0
  %627 = vmatpush1.msra.mxu0 0.0
  %628 = vmatprep.subr.mxu0 0.0
  %629 = vmatpush1.msra.mxu0 0.0
  %630 = vmatprep.subr.mxu0 0.0
  %631 = vmatpush1.msra.mxu0 0.0
  %632 = vmatprep.subr.mxu0 0.0
  %633 = vmatpush1.msra.mxu0 0.0
  %634 = vmatprep.subr.mxu0 0.0
  %635 = vmatpush1.msra.mxu0 0.0
  %636 = vmatprep.subr.mxu0 0.0
  %637 = vmatpush1.msra.mxu0 0.0
  %638 = vmatprep.subr.mxu0 0.0
  %639 = vmatpush1.msra.mxu0 0.0
  %640 = vmatprep.subr.mxu0 0.0
  %641 = vmatpush1.msra.mxu0 0.0
  %642 = vmatprep.subr.mxu0 0.0
  %643 = vmatpush1.msra.mxu0 0.0
  %644 = vmatprep.subr.mxu0 0.0
  %645 = vmatpush1.msra.mxu0 0.0
  %646 = vmatprep.subr.mxu0 0.0
  %647 = vmatpush1.msra.mxu0 0.0
  %648 = vmatprep.subr.mxu0 0.0
  %649 = vmatpush1.msra.mxu0 0.0
  %650 = vmatprep.subr.mxu0 0.0
  %651 = vmatpush1.msra.mxu0 0.0
  %652 = vmatprep.mubr.f32.mxu0 0.0
  %653 = vmatmul.mubr.f32.gmra.mrb[0].mxu0 %v278
  %v654 = vpop.f32.mrb[0].mxu0
  %v655 = vadd.f32 0.0, %v654
  %v656 = vpop.f32.mrb[0].mxu0
  %657 = vmatprep.mubr.f32.mxu0 0.0
  %658 = vmatmul.mubr.f32.gmra.mrb[0].mxu0 %v281
  %v659 = vpop.f32.mrb[0].mxu0
  %v660 = vadd.f32 0.0, %v659
  %v661 = vpop.f32.mrb[0].mxu0
  %662 = vmatprep.mubr.f32.mxu0 0.0
  %663 = vmatmul.mubr.f32.gmra.mrb[0].mxu0 %v284
  %v664 = vpop.f32.mrb[0].mxu0
  %v665 = vadd.f32 0.0, %v664
  %v666 = vpop.f32.mrb[0].mxu0
  %667 = vmatprep.mubr.f32.mxu0 0.0
  %668 = vmatmul.mubr.f32.gmra.mrb[0].mxu0 %v287
  %v669 = vpop.f32.mrb[0].mxu0
  %v670 = vadd.f32 0.0, %v669
  %v671 = vpop.f32.mrb[0].mxu0
  %672 = vdwg.mxu0
  %673 = vmatprep.subr.mxu0 0.0
  %674 = vmatpush1.msra.mxu0 %v585
  %675 = vmatprep.subr.mxu0 0.0
  %676 = vmatpush1.msra.mxu0 0.0
  %677 = vmatprep.subr.mxu0 0.0
  %678 = vmatpush1.msra.mxu0 0.0
  %679 = vmatprep.subr.mxu0 0.0
  %680 = vmatpush1.msra.mxu0 0.0
  %681 = vmatprep.subr.mxu0 0.0
  %682 = vmatpush1.msra.mxu0 0.0
  %683 = vmatprep.subr.mxu0 0.0
  %684 = vmatpush1.msra.mxu0 0.0
  %685 = vmatprep.subr.mxu0 0.0
  %686 = vmatpush1.msra.mxu0 0.0
  %687 = vmatprep.subr.mxu0 0.0
  %688 = vmatpush1.msra.mxu0 0.0
  %689 = vmatprep.subr.mxu0 0.0
  %690 = vmatpush1.msra.mxu0 0.0
  %691 = vmatprep.subr.mxu0 0.0
  %692 = vmatpush1.msra.mxu0 0.0
  %693 = vmatprep.subr.mxu0 0.0
  %694 = vmatpush1.msra.mxu0 0.0
  %695 = vmatprep.subr.mxu0 0.0
  %696 = vmatpush1.msra.mxu0 0.0
  %697 = vmatprep.subr.mxu0 0.0
  %698 = vmatpush1.msra.mxu0 0.0
  %699 = vmatprep.subr.mxu0 0.0
  %700 = vmatpush1.msra.mxu0 0.0
  %701 = vmatprep.subr.mxu0 0.0
  %702 = vmatpush1.msra.mxu0 0.0
  %703 = vmatprep.subr.mxu0 0.0
  %704 = vmatpush1.msra.mxu0 0.0
  %705 = vmatprep.subr.mxu0 0.0
  %706 = vmatpush1.msra.mxu0 0.0
  %707 = vmatprep.subr.mxu0 0.0
  %708 = vmatpush1.msra.mxu0 0.0
  %709 = vmatprep.subr.mxu0 0.0
  %710 = vmatpush1.msra.mxu0 0.0
  %711 = vmatprep.subr.mxu0 0.0
  %712 = vmatpush1.msra.mxu0 0.0
  %713 = vmatprep.subr.mxu0 0.0
  %714 = vmatpush1.msra.mxu0 0.0
  %715 = vmatprep.subr.mxu0 0.0
  %716 = vmatpush1.msra.mxu0 0.0
  %717 = vmatprep.subr.mxu0 0.0
  %718 = vmatpush1.msra.mxu0 0.0
  %719 = vmatprep.subr.mxu0 0.0
  %720 = vmatpush1.msra.mxu0 0.0
  %721 = vmatprep.subr.mxu0 0.0
  %722 = vmatpush1.msra.mxu0 0.0
  %723 = vmatprep.subr.mxu0 0.0
  %724 = vmatpush1.msra.mxu0 0.0
  %725 = vmatprep.subr.mxu0 0.0
  %726 = vmatpush1.msra.mxu0 0.0
  %727 = vmatprep.subr.mxu0 0.0
  %728 = vmatpush1.msra.mxu0 0.0
  %729 = vmatprep.subr.mxu0 0.0
  %730 = vmatpush1.msra.mxu0 0.0
  %731 = vmatprep.subr.mxu0 0.0
  %732 = vmatpush1.msra.mxu0 0.0
  %733 = vmatprep.subr.mxu0 0.0
  %734 = vmatpush1.msra.mxu0 0.0
  %735 = vmatprep.subr.mxu0 0.0
  %736 = vmatpush1.msra.mxu0 0.0
  %737 = vmatprep.mubr.f32.mxu0 0.0
  %738 = vmatmul.mubr.f32.gmra.mrb[0].mxu0 %v375
  %v739 = vpop.f32.mrb[0].mxu0
  %v740 = vadd.f32 %v655, %v739
  %v741 = vpop.f32.mrb[0].mxu0
  %742 = vmatprep.mubr.f32.mxu0 0.0
  %743 = vmatmul.mubr.f32.gmra.mrb[0].mxu0 %v378
  %v744 = vpop.f32.mrb[0].mxu0
  %v745 = vadd.f32 %v660, %v744
  %v746 = vpop.f32.mrb[0].mxu0
  %747 = vmatprep.mubr.f32.mxu0 0.0
  %748 = vmatmul.mubr.f32.gmra.mrb[0].mxu0 %v381
  %v749 = vpop.f32.mrb[0].mxu0
  %v750 = vadd.f32 %v665, %v749
  %v751 = vpop.f32.mrb[0].mxu0
  %752 = vmatprep.mubr.f32.mxu0 0.0
  %753 = vmatmul.mubr.f32.gmra.mrb[0].mxu0 %v384
  %v754 = vpop.f32.mrb[0].mxu0
  %v755 = vadd.f32 %v670, %v754
  %v756 = vpop.f32.mrb[0].mxu0
  %757 = vdwg.mxu0
  %s758 = scalar_lea.vmem %s6, 16
  %v759 = vld [vmem:[%s758] sm:$0xff]
  %760 = vmatprep.subr.mxu0 0.0
  %761 = vmatpush1.msra.mxu0 %v759
  %762 = vmatprep.subr.mxu0 0.0
  %763 = vmatpush1.msra.mxu0 0.0
  %764 = vmatprep.subr.mxu0 0.0
  %765 = vmatpush1.msra.mxu0 0.0
  %766 = vmatprep.subr.mxu0 0.0
  %767 = vmatpush1.msra.mxu0 0.0
  %768 = vmatprep.subr.mxu0 0.0
  %769 = vmatpush1.msra.mxu0 0.0
  %770 = vmatprep.subr.mxu0 0.0
  %771 = vmatpush1.msra.mxu0 0.0
  %772 = vmatprep.subr.mxu0 0.0
  %773 = vmatpush1.msra.mxu0 0.0
  %774 = vmatprep.subr.mxu0 0.0
  %775 = vmatpush1.msra.mxu0 0.0
  %776 = vmatprep.subr.mxu0 0.0
  %777 = vmatpush1.msra.mxu0 0.0
  %778 = vmatprep.subr.mxu0 0.0
  %779 = vmatpush1.msra.mxu0 0.0
  %780 = vmatprep.subr.mxu0 0.0
  %781 = vmatpush1.msra.mxu0 0.0
  %782 = vmatprep.subr.mxu0 0.0
  %783 = vmatpush1.msra.mxu0 0.0
  %784 = vmatprep.subr.mxu0 0.0
  %785 = vmatpush1.msra.mxu0 0.0
  %786 = vmatprep.subr.mxu0 0.0
  %787 = vmatpush1.msra.mxu0 0.0
  %788 = vmatprep.subr.mxu0 0.0
  %789 = vmatpush1.msra.mxu0 0.0
  %790 = vmatprep.subr.mxu0 0.0
  %791 = vmatpush1.msra.mxu0 0.0
  %792 = vmatprep.subr.mxu0 0.0
  %793 = vmatpush1.msra.mxu0 0.0
  %794 = vmatprep.subr.mxu0 0.0
  %795 = vmatpush1.msra.mxu0 0.0
  %796 = vmatprep.subr.mxu0 0.0
  %797 = vmatpush1.msra.mxu0 0.0
  %798 = vmatprep.subr.mxu0 0.0
  %799 = vmatpush1.msra.mxu0 0.0
  %800 = vmatprep.subr.mxu0 0.0
  %801 = vmatpush1.msra.mxu0 0.0
  %802 = vmatprep.subr.mxu0 0.0
  %803 = vmatpush1.msra.mxu0 0.0
  %804 = vmatprep.subr.mxu0 0.0
  %805 = vmatpush1.msra.mxu0 0.0
  %806 = vmatprep.subr.mxu0 0.0
  %807 = vmatpush1.msra.mxu0 0.0
  %808 = vmatprep.subr.mxu0 0.0
  %809 = vmatpush1.msra.mxu0 0.0
  %810 = vmatprep.subr.mxu0 0.0
  %811 = vmatpush1.msra.mxu0 0.0
  %812 = vmatprep.subr.mxu0 0.0
  %813 = vmatpush1.msra.mxu0 0.0
  %814 = vmatprep.subr.mxu0 0.0
  %815 = vmatpush1.msra.mxu0 0.0
  %816 = vmatprep.subr.mxu0 0.0
  %817 = vmatpush1.msra.mxu0 0.0
  %818 = vmatprep.subr.mxu0 0.0
  %819 = vmatpush1.msra.mxu0 0.0
  %820 = vmatprep.subr.mxu0 0.0
  %821 = vmatpush1.msra.mxu0 0.0
  %822 = vmatprep.subr.mxu0 0.0
  %823 = vmatpush1.msra.mxu0 0.0
  %824 = vmatprep.mubr.f32.mxu0 0.0
  %825 = vmatmul.mubr.f32.gmra.mrb[0].mxu0 %v474
  %v826 = vpop.f32.mrb[0].mxu0
  %v827 = vadd.f32 0.0, %v826
  %v828 = vpop.f32.mrb[0].mxu0
  %829 = vmatprep.mubr.f32.mxu0 0.0
  %830 = vmatmul.mubr.f32.gmra.mrb[0].mxu0 %v477
  %v831 = vpop.f32.mrb[0].mxu0
  %v832 = vadd.f32 0.0, %v831
  %v833 = vpop.f32.mrb[0].mxu0
  %834 = vmatprep.mubr.f32.mxu0 0.0
  %835 = vmatmul.mubr.f32.gmra.mrb[0].mxu0 %v480
  %v836 = vpop.f32.mrb[0].mxu0
  %v837 = vadd.f32 0.0, %v836
  %v838 = vpop.f32.mrb[0].mxu0
  %839 = vmatprep.mubr.f32.mxu0 0.0
  %840 = vmatmul.mubr.f32.gmra.mrb[0].mxu0 %v483
  %v841 = vpop.f32.mrb[0].mxu0
  %v842 = vadd.f32 0.0, %v841
  %v843 = vpop.f32.mrb[0].mxu0
  %844 = vdwg.mxu0
  %v845 = vadd.f32 %v740, %v827
  %v846 = vadd.f32 %v745, %v832
  %v847 = vadd.f32 %v750, %v837
  %v848 = vadd.f32 %v755, %v842
  %v849 = vld [vmem:[%s7] sm:$0x1]
  %v851 = vlaneseq
  %v852 = vshrl.u32 %v851, 7
  %v853 = vsub.s32 0, %v852
  %v854 = vrot.slane %v849, %v853
  %v856 = vadd.f32 %v845, %v854
  %v857 = vadd.f32 %v846, %v854
  %v858 = vadd.f32 %v847, %v854
  %v859 = vadd.f32 %v848, %v854
  %v860 = vxor.u32 %v581, 2147483648
  %v861 = vxor.u32 %v582, 2147483648
  %v862 = vxor.u32 %v583, 2147483648
  %v863 = vxor.u32 %v584, 2147483648
  %v864 = vmul.f32 %v860, 1.442695
  %v865 = vpow.pop %v864
  %v866 = vmul.f32 %v861, 1.442695
  %v867 = vpow.pop %v866
  %v868 = vmul.f32 %v862, 1.442695
  %v869 = vpow.pop %v868
  %v870 = vmul.f32 %v863, 1.442695
  %v871 = vpow.pop %v870
  %v872 = vadd.f32 %v865, 1.0
  %v873 = vadd.f32 %v867, 1.0
  %v874 = vadd.f32 %v869, 1.0
  %v875 = vadd.f32 %v871, 1.0
  %v876 = vrcp.pop %v872
  %v877 = vmul.f32 1.0, %v876
  %v878 = vrcp.pop %v873
  %v879 = vmul.f32 1.0, %v878
  %v880 = vrcp.pop %v874
  %v881 = vmul.f32 1.0, %v880
  %v882 = vrcp.pop %v875
  %v883 = vmul.f32 1.0, %v882
  %v884 = vtanh.pop %v856
  %v885 = vtanh.pop %v857
  %v886 = vtanh.pop %v858
  %v887 = vtanh.pop %v859
  %v888 = vmul.f32 %v877, %v884
  %v889 = vmul.f32 %v879, %v885
  %v890 = vmul.f32 %v881, %v886
  %v891 = vmul.f32 %v883, %v887
  %v892 = vld [vmem:[%s8] sm:$0xff]
  %v894 = vsel %vm276, %v888, 0
  %v897 = vsel %vm276, %v889, 0
  %v900 = vsel %vm276, %v890, 0
  %v903 = vsel %vm276, %v891, 0
  %905 = vmatprep.subr.mxu0 0.0
  %906 = vmatpush1.msra.mxu0 %v892
  %907 = vmatprep.subr.mxu0 0.0
  %908 = vmatpush1.msra.mxu0 0.0
  %909 = vmatprep.subr.mxu0 0.0
  %910 = vmatpush1.msra.mxu0 0.0
  %911 = vmatprep.subr.mxu0 0.0
  %912 = vmatpush1.msra.mxu0 0.0
  %913 = vmatprep.subr.mxu0 0.0
  %914 = vmatpush1.msra.mxu0 0.0
  %915 = vmatprep.subr.mxu0 0.0
  %916 = vmatpush1.msra.mxu0 0.0
  %917 = vmatprep.subr.mxu0 0.0
  %918 = vmatpush1.msra.mxu0 0.0
  %919 = vmatprep.subr.mxu0 0.0
  %920 = vmatpush1.msra.mxu0 0.0
  %921 = vmatprep.subr.mxu0 0.0
  %922 = vmatpush1.msra.mxu0 0.0
  %923 = vmatprep.subr.mxu0 0.0
  %924 = vmatpush1.msra.mxu0 0.0
  %925 = vmatprep.subr.mxu0 0.0
  %926 = vmatpush1.msra.mxu0 0.0
  %927 = vmatprep.subr.mxu0 0.0
  %928 = vmatpush1.msra.mxu0 0.0
  %929 = vmatprep.subr.mxu0 0.0
  %930 = vmatpush1.msra.mxu0 0.0
  %931 = vmatprep.subr.mxu0 0.0
  %932 = vmatpush1.msra.mxu0 0.0
  %933 = vmatprep.subr.mxu0 0.0
  %934 = vmatpush1.msra.mxu0 0.0
  %935 = vmatprep.subr.mxu0 0.0
  %936 = vmatpush1.msra.mxu0 0.0
  %937 = vmatprep.subr.mxu0 0.0
  %938 = vmatpush1.msra.mxu0 0.0
  %939 = vmatprep.subr.mxu0 0.0
  %940 = vmatpush1.msra.mxu0 0.0
  %941 = vmatprep.subr.mxu0 0.0
  %942 = vmatpush1.msra.mxu0 0.0
  %943 = vmatprep.subr.mxu0 0.0
  %944 = vmatpush1.msra.mxu0 0.0
  %945 = vmatprep.subr.mxu0 0.0
  %946 = vmatpush1.msra.mxu0 0.0
  %947 = vmatprep.subr.mxu0 0.0
  %948 = vmatpush1.msra.mxu0 0.0
  %949 = vmatprep.subr.mxu0 0.0
  %950 = vmatpush1.msra.mxu0 0.0
  %951 = vmatprep.subr.mxu0 0.0
  %952 = vmatpush1.msra.mxu0 0.0
  %953 = vmatprep.subr.mxu0 0.0
  %954 = vmatpush1.msra.mxu0 0.0
  %955 = vmatprep.subr.mxu0 0.0
  %956 = vmatpush1.msra.mxu0 0.0
  %957 = vmatprep.subr.mxu0 0.0
  %958 = vmatpush1.msra.mxu0 0.0
  %959 = vmatprep.subr.mxu0 0.0
  %960 = vmatpush1.msra.mxu0 0.0
  %961 = vmatprep.subr.mxu0 0.0
  %962 = vmatpush1.msra.mxu0 0.0
  %963 = vmatprep.subr.mxu0 0.0
  %964 = vmatpush1.msra.mxu0 0.0
  %965 = vmatprep.subr.mxu0 0.0
  %966 = vmatpush1.msra.mxu0 0.0
  %967 = vmatprep.subr.mxu0 0.0
  %968 = vmatpush1.msra.mxu0 0.0
  %969 = vmatprep.mubr.f32.mxu0 0.0
  %970 = vmatmul.mubr.f32.gmra.mrb[0].mxu0 %v894
  %v971 = vpop.f32.mrb[0].mxu0
  %v972 = vadd.f32 0.0, %v971
  %v973 = vpop.f32.mrb[0].mxu0
  %974 = vmatprep.mubr.f32.mxu0 0.0
  %975 = vmatmul.mubr.f32.gmra.mrb[0].mxu0 %v897
  %v976 = vpop.f32.mrb[0].mxu0
  %v977 = vadd.f32 0.0, %v976
  %v978 = vpop.f32.mrb[0].mxu0
  %979 = vmatprep.mubr.f32.mxu0 0.0
  %980 = vmatmul.mubr.f32.gmra.mrb[0].mxu0 %v900
  %v981 = vpop.f32.mrb[0].mxu0
  %v982 = vadd.f32 0.0, %v981
  %v983 = vpop.f32.mrb[0].mxu0
  %984 = vmatprep.mubr.f32.mxu0 0.0
  %985 = vmatmul.mubr.f32.gmra.mrb[0].mxu0 %v903
  %v986 = vpop.f32.mrb[0].mxu0
  %v987 = vadd.f32 0.0, %v986
  %v988 = vpop.f32.mrb[0].mxu0
  %989 = vdwg.mxu0
  %v990 = vadd.f32 %v43, %v972
  %v991 = vadd.f32 %v44, %v977
  %v992 = vadd.f32 %v45, %v982
  %v993 = vadd.f32 %v46, %v987
  %v994 = vld [vmem:[%s9] sm:$0x1]
  %v996 = vlaneseq
  %v997 = vshrl.u32 %v996, 7
  %v998 = vsub.s32 0, %v997
  %v999 = vrot.slane %v994, %v998
  %v1001 = vadd.f32 %v990, %v999
  %v1002 = vadd.f32 %v991, %v999
  %v1003 = vadd.f32 %v992, %v999
  %v1004 = vadd.f32 %v993, %v999
  %v1005 = vmul.f32 %v1001, 0.70710677
  %v1006 = vmul.f32 %v1002, 0.70710677
  %v1007 = vmul.f32 %v1003, 0.70710677
  %v1008 = vmul.f32 %v1004, 0.70710677
  %1009 = vst.msk [vmem:[%s12] sm:$0xff] %vm276, %v1005
  %1010 = vst.msk [vmem:[%s12 + $0x8] sm:$0xff] %vm276, %v1006
  %1011 = vst.msk [vmem:[%s12 + $0x10] sm:$0xff] %vm276, %v1007
  %1012 = vst.msk [vmem:[%s12 + $0x18] sm:$0xff] %vm276, %v1008
  %v1013 = vld [vmem:[%s10] sm:$0xff]
  %v1014 = vld [vmem:[%s11] sm:$0x1]
  %v1016 = vlaneseq
  %v1017 = vshrl.u32 %v1016, 7
  %v1018 = vsub.s32 0, %v1017
  %v1019 = vrot.slane %v1014, %v1018
  %1021 = vmatprep.subr.mxu0 0.0
  %1022 = vmatpush1.msra.mxu0 %v1013
  %1023 = vmatprep.subr.mxu0 0.0
  %1024 = vmatpush1.msra.mxu0 0.0
  %1025 = vmatprep.subr.mxu0 0.0
  %1026 = vmatpush1.msra.mxu0 0.0
  %1027 = vmatprep.subr.mxu0 0.0
  %1028 = vmatpush1.msra.mxu0 0.0
  %1029 = vmatprep.subr.mxu0 0.0
  %1030 = vmatpush1.msra.mxu0 0.0
  %1031 = vmatprep.subr.mxu0 0.0
  %1032 = vmatpush1.msra.mxu0 0.0
  %1033 = vmatprep.subr.mxu0 0.0
  %1034 = vmatpush1.msra.mxu0 0.0
  %1035 = vmatprep.subr.mxu0 0.0
  %1036 = vmatpush1.msra.mxu0 0.0
  %1037 = vmatprep.subr.mxu0 0.0
  %1038 = vmatpush1.msra.mxu0 0.0
  %1039 = vmatprep.subr.mxu0 0.0
  %1040 = vmatpush1.msra.mxu0 0.0
  %1041 = vmatprep.subr.mxu0 0.0
  %1042 = vmatpush1.msra.mxu0 0.0
  %1043 = vmatprep.subr.mxu0 0.0
  %1044 = vmatpush1.msra.mxu0 0.0
  %1045 = vmatprep.subr.mxu0 0.0
  %1046 = vmatpush1.msra.mxu0 0.0
  %1047 = vmatprep.subr.mxu0 0.0
  %1048 = vmatpush1.msra.mxu0 0.0
  %1049 = vmatprep.subr.mxu0 0.0
  %1050 = vmatpush1.msra.mxu0 0.0
  %1051 = vmatprep.subr.mxu0 0.0
  %1052 = vmatpush1.msra.mxu0 0.0
  %1053 = vmatprep.subr.mxu0 0.0
  %1054 = vmatpush1.msra.mxu0 0.0
  %1055 = vmatprep.subr.mxu0 0.0
  %1056 = vmatpush1.msra.mxu0 0.0
  %1057 = vmatprep.subr.mxu0 0.0
  %1058 = vmatpush1.msra.mxu0 0.0
  %1059 = vmatprep.subr.mxu0 0.0
  %1060 = vmatpush1.msra.mxu0 0.0
  %1061 = vmatprep.subr.mxu0 0.0
  %1062 = vmatpush1.msra.mxu0 0.0
  %1063 = vmatprep.subr.mxu0 0.0
  %1064 = vmatpush1.msra.mxu0 0.0
  %1065 = vmatprep.subr.mxu0 0.0
  %1066 = vmatpush1.msra.mxu0 0.0
  %1067 = vmatprep.subr.mxu0 0.0
  %1068 = vmatpush1.msra.mxu0 0.0
  %1069 = vmatprep.subr.mxu0 0.0
  %1070 = vmatpush1.msra.mxu0 0.0
  %1071 = vmatprep.subr.mxu0 0.0
  %1072 = vmatpush1.msra.mxu0 0.0
  %1073 = vmatprep.subr.mxu0 0.0
  %1074 = vmatpush1.msra.mxu0 0.0
  %1075 = vmatprep.subr.mxu0 0.0
  %1076 = vmatpush1.msra.mxu0 0.0
  %1077 = vmatprep.subr.mxu0 0.0
  %1078 = vmatpush1.msra.mxu0 0.0
  %1079 = vmatprep.subr.mxu0 0.0
  %1080 = vmatpush1.msra.mxu0 0.0
  %1081 = vmatprep.subr.mxu0 0.0
  %1082 = vmatpush1.msra.mxu0 0.0
  %1083 = vmatprep.subr.mxu0 0.0
  %1084 = vmatpush1.msra.mxu0 0.0
  %1085 = vmatprep.mubr.f32.mxu0 0.0
  %1086 = vmatmul.mubr.f32.gmra.mrb[0].mxu0 %v894
  %v1087 = vpop.f32.mrb[0].mxu0
  %v1088 = vadd.f32 %v1019, %v1087
  %v1089 = vpop.f32.mrb[0].mxu0
  %1090 = vmatprep.mubr.f32.mxu0 0.0
  %1091 = vmatmul.mubr.f32.gmra.mrb[0].mxu0 %v897
  %v1092 = vpop.f32.mrb[0].mxu0
  %v1093 = vadd.f32 %v1019, %v1092
  %v1094 = vpop.f32.mrb[0].mxu0
  %1095 = vmatprep.mubr.f32.mxu0 0.0
  %1096 = vmatmul.mubr.f32.gmra.mrb[0].mxu0 %v900
  %v1097 = vpop.f32.mrb[0].mxu0
  %v1098 = vadd.f32 %v1019, %v1097
  %v1099 = vpop.f32.mrb[0].mxu0
  %1100 = vmatprep.mubr.f32.mxu0 0.0
  %1101 = vmatmul.mubr.f32.gmra.mrb[0].mxu0 %v903
  %v1102 = vpop.f32.mrb[0].mxu0
  %v1103 = vadd.f32 %v1019, %v1102
  %v1104 = vpop.f32.mrb[0].mxu0
  %1105 = vdwg.mxu0
  %1106 = vst.msk [vmem:[%s13] sm:$0xff] %vm276, %v1088
  %1107 = vst.msk [vmem:[%s13 + $0x8] sm:$0xff] %vm276, %v1093
  %1108 = vst.msk [vmem:[%s13 + $0x10] sm:$0xff] %vm276, %v1098
  %1109 = vst.msk [vmem:[%s13 + $0x18] sm:$0xff] %vm276, %v1103
  // Predicated region
  $region50: #{tpu_custom_call.1} parent=0 // pred_check
    _
  $region51: #{tpu_custom_call.1} parent=0 // pred_check_branch
    %1111 = sbr.rel (0) target = $region53
  $region52: #{tpu_custom_call.1} parent=0 // pred_region
    _
  $region53: #{tpu_custom_call.1} parent=0 // pred_fallthru
    _
  // Predicated region
  $region54: #{tpu_custom_call.1} parent=0 // pred_check
    _
  $region55: #{tpu_custom_call.1} parent=0 // pred_check_branch
    %1113 = sbr.rel (0) target = $region57
  $region56: #{tpu_custom_call.1} parent=0 // pred_region
    _
  $region57: #{tpu_custom_call.1} parent=0 // pred_fallthru
    _
  // Predicated region
  $region58: #{tpu_custom_call.1} parent=0 // pred_check
    _
  $region59: #{tpu_custom_call.1} parent=0 // pred_check_branch
    %1115 = sbr.rel (0) target = $region61
  $region60: #{tpu_custom_call.1} parent=0 // pred_region
    _
  $region61: #{tpu_custom_call.1} parent=0 // pred_fallthru
    _
  // Predicated region
  $region62: #{tpu_custom_call.1} parent=0 // pred_check
    _
  $region63: #{tpu_custom_call.1} parent=0 // pred_check_branch
    %1117 = sbr.rel (0) target = $region65
  $region64: #{tpu_custom_call.1} parent=0 // pred_region
    _
  $region65: #{tpu_custom_call.1} parent=0 // pred_fallthru
    _

</llo_original>
